<compile_context>
chip_gen: v6e
topology: v6e:2x2x1
jax: 0.10.0
libtpu: 0.0.40
codegen_flags: <defaults>
</compile_context>

<pallas_src>
import jax
import jax.numpy as jnp
from jax.experimental import pallas as pl
from jax.experimental.pallas import tpu as pltpu


def _round_up(n, m):
    return ((n + m - 1) // m) * m


def _make_kernel(n_in, n_out, no_p):
    # K = n_in is tiny (2): feeding the systolic array costs a full push/pop for
    # ~1.5% utilization.  Do it as broadcast FMAs on the VPU instead.
    use_vpu_l1 = n_in <= 8

    def _mlp_kernel(x_ref, w1_ref, b1_ref, wh_ref, bh_ref, wout_ref, bout_ref, o_ref):
        x = x_ref[...]                                   # (tb, n_in) f32
        w1 = w1_ref[...]                                 # (n_in, nh_p); scale already folded in

        # ---- l1 + ReLU ----
        if use_vpu_l1:
            h = b1_ref[...]                              # (1, nh_p) broadcasts
            for i in range(n_in):                        # static unroll, n_in tiny
                h = h + x[:, i:i + 1] * w1[i:i + 1, :]
        else:
            h = jnp.dot(x, w1, preferred_element_type=jnp.float32) + b1_ref[...]
        h = jnp.maximum(h, 0.0)

        # ---- lh + ReLU ----
        h = jnp.dot(h, wh_ref[...], preferred_element_type=jnp.float32) + bh_ref[...]
        h = jnp.maximum(h, 0.0)

        # ---- lout ----
        o = jnp.dot(h, wout_ref[...], preferred_element_type=jnp.float32) + bout_ref[...]
        if n_out < no_p:
            o = o[:, :n_out]                             # narrow store: only real columns hit HBM
        o_ref[...] = o.astype(o_ref.dtype)

    return _mlp_kernel


def prepare_true_mlp_params(scale, w1, b1, wh, bh, wout, bout):
    """One-time host-side prep (hoisted out of the per-call path).

    Folds input_scale into w1 ((x/s) @ W == x @ (W / s[:, None])) and zero-pads
    the hidden / output feature dims to 128 lanes so every matmul operand is
    lane-aligned.  Padded columns have zero weights + zero bias, so ReLU keeps
    them exactly 0 and they contribute nothing.
    """
    f32 = jnp.float32
    n_in, n_hidden = w1.shape
    n_out = wout.shape[1]

    scale_v = jnp.reshape(scale, (n_in,)).astype(f32)
    w1_eff = w1.astype(f32) / scale_v[:, None]

    nh_p = _round_up(max(n_hidden, 128), 128)
    no_p = _round_up(max(n_out, 128), 128)

    w1_p = jnp.zeros((n_in, nh_p), f32).at[:, :n_hidden].set(w1_eff)
    b1_p = jnp.zeros((1, nh_p), f32).at[:, :n_hidden].set(jnp.reshape(b1, (1, n_hidden)).astype(f32))
    wh_p = jnp.zeros((nh_p, nh_p), f32).at[:n_hidden, :n_hidden].set(wh.astype(f32))
    bh_p = jnp.zeros((1, nh_p), f32).at[:, :n_hidden].set(jnp.reshape(bh, (1, n_hidden)).astype(f32))
    wo_p = jnp.zeros((nh_p, no_p), f32).at[:n_hidden, :n_out].set(wout.astype(f32))
    bo_p = jnp.zeros((1, no_p), f32).at[:, :n_out].set(jnp.reshape(bout, (1, n_out)).astype(f32))

    params = (w1_p, b1_p, wh_p, bh_p, wo_p, bo_p)
    dims = {"n_in": n_in, "n_hidden": n_hidden, "n_out": n_out, "nh_p": nh_p, "no_p": no_p}
    return params, dims


def true_mlp_forward(x, params, dims, *, tb=1024):
    """Fused TrueMLP forward.  x: (B, n_in) f32; params from prepare_true_mlp_params."""
    w1_p, b1_p, wh_p, bh_p, wo_p, bo_p = params
    n_in, n_out = dims["n_in"], dims["n_out"]
    nh_p, no_p = dims["nh_p"], dims["no_p"]

    B = x.shape[0]
    assert x.shape[1] == n_in

    # --- pick the batch tile -------------------------------------------------
    tb = max(8, (tb // 8) * 8)          # multiple of 8 (sublane)
    B_r = _round_up(B, 8)
    tb = min(tb, B_r)                   # clamp to the real batch: no padded work for small B
    # v7x megacore: keep >= 2 grid steps when the batch allows it so the
    # "parallel" axis shards across both TensorCores (no-op on v5e/v6e).
    if tb == B_r and B_r >= 16:
        tb = _round_up(B_r // 2, 8)

    n_tiles = pl.cdiv(B, tb)
    B_pad = n_tiles * tb

    x_p = x.astype(jnp.float32)
    if B_pad != B:
        x_p = jnp.zeros((B_pad, n_in), jnp.float32).at[:B].set(x_p)

    kernel = _make_kernel(n_in, n_out, no_p)

    in_specs = [
        pl.BlockSpec((tb, n_in), lambda i: (i, 0)),     # x     (batch-tiled)
        pl.BlockSpec((n_in, nh_p), lambda i: (0, 0)),   # w1    (VMEM-resident, constant idx)
        pl.BlockSpec((1, nh_p), lambda i: (0, 0)),      # b1
        pl.BlockSpec((nh_p, nh_p), lambda i: (0, 0)),   # wh
        pl.BlockSpec((1, nh_p), lambda i: (0, 0)),      # bh
        pl.BlockSpec((nh_p, no_p), lambda i: (0, 0)),   # wout
        pl.BlockSpec((1, no_p), lambda i: (0, 0)),      # bout
    ]
    # Narrow (un-padded) output: last block dim == full array dim (legal), so the
    # HBM writeback carries only the n_out real columns, not 128 padded lanes.
    out_specs = pl.BlockSpec((tb, n_out), lambda i: (i, 0))

    out = pl.pallas_call(
        kernel,
        out_shape=jax.ShapeDtypeStruct((B_pad, n_out), jnp.float32),
        grid_spec=pltpu.PrefetchScalarGridSpec(
            num_scalar_prefetch=0,
            grid=(n_tiles,),
            in_specs=in_specs,
            out_specs=out_specs,
        ),
        compiler_params=pltpu.CompilerParams(
            dimension_semantics=("parallel",)),
    )(x_p, w1_p, b1_p, wh_p, bh_p, wo_p, bo_p)

    return out[:B] if B_pad != B else out


def _reference_forward(x, scale, w1, b1, wh, bh, wout, bout):
    # Matches the PyTorch module: divide each input column by input_scale[i].
    x = x / jnp.reshape(scale, (1, -1))
    h = jnp.maximum(x @ w1 + jnp.reshape(b1, (1, -1)), 0.0)
    h = jnp.maximum(h @ wh + jnp.reshape(bh, (1, -1)), 0.0)
    return h @ wout + jnp.reshape(bout, (1, -1))


if __name__ == "__main__":
    # Shapes implied by the module: n_input=2 (input_scale has 2 entries),
    # n_hidden=32, n_output=2, small batch=8.
    B, n_input, n_hidden, n_output = 8, 2, 32, 2

    key = jax.random.PRNGKey(0)
    kx, k1, kb1, kh, kbh, ko, kbo = jax.random.split(key, 7)

    x = jax.random.normal(kx, (B, n_input), dtype=jnp.float32)

    # Deterministic synthetic parameters (stored as (in, out)).
    w1 = jax.random.normal(k1, (n_input, n_hidden), dtype=jnp.float32) * 0.1
    b1 = jax.random.normal(kb1, (n_hidden,), dtype=jnp.float32) * 0.1
    wh = jax.random.normal(kh, (n_hidden, n_hidden), dtype=jnp.float32) * 0.1
    bh = jax.random.normal(kbh, (n_hidden,), dtype=jnp.float32) * 0.1
    wout = jax.random.normal(ko, (n_hidden, n_output), dtype=jnp.float32) * 0.1
    bout = jax.random.normal(kbo, (n_output,), dtype=jnp.float32) * 0.1

    # register_buffer('input_scale', tensor([0.3, 50]))
    scale = jnp.array([0.3, 50.0], dtype=jnp.float32)

    # One-time prep (cached across forwards; NOT in the per-call hot path).
    params, dims = prepare_true_mlp_params(scale, w1, b1, wh, bh, wout, bout)
    params = jax.block_until_ready(params)

    out = true_mlp_forward(x, params, dims)
    out = jax.block_until_ready(out)

    ref = _reference_forward(x, scale, w1, b1, wh, bh, wout, bout)
    assert out.shape == (B, n_output)
    assert jnp.allclose(out, ref, atol=1e-5, rtol=1e-5), "mismatch vs reference"

    print("KERNEL_OK")
</pallas_src>

<mosaic_0001>
module attributes {stable_mosaic.version = 11 : i64} {
  func.func @_mlp_kernel(%arg0: i32, %arg1: memref<8x2xf32, #tpu.memory_space<vmem>>, %arg2: memref<2x128xf32, #tpu.memory_space<vmem>>, %arg3: memref<1x128xf32, #tpu.memory_space<vmem>>, %arg4: memref<128x128xf32, #tpu.memory_space<vmem>>, %arg5: memref<1x128xf32, #tpu.memory_space<vmem>>, %arg6: memref<128x128xf32, #tpu.memory_space<vmem>>, %arg7: memref<1x128xf32, #tpu.memory_space<vmem>>, %arg8: memref<8x2xf32, #tpu.memory_space<vmem>>) attributes {dimension_semantics = [#tpu.dimension_semantics<parallel>], iteration_bounds = array<i64: 1>, scalar_prefetch = 0 : i64, scratch_operands = 0 : i64, tpu.core_type = #tpu.core_type<tc>, window_params = [{transform_indices = @transform_0, window_bounds = array<i64: 8, 2>}, {pipeline_mode = #tpu.pipeline_mode<synchronous>, transform_indices = @transform_1, window_bounds = array<i64: 2, 128>}, {pipeline_mode = #tpu.pipeline_mode<synchronous>, transform_indices = @transform_2, window_bounds = array<i64: 1, 128>}, {pipeline_mode = #tpu.pipeline_mode<synchronous>, transform_indices = @transform_3, window_bounds = array<i64: 128, 128>}, {pipeline_mode = #tpu.pipeline_mode<synchronous>, transform_indices = @transform_4, window_bounds = array<i64: 1, 128>}, {pipeline_mode = #tpu.pipeline_mode<synchronous>, transform_indices = @transform_5, window_bounds = array<i64: 128, 128>}, {pipeline_mode = #tpu.pipeline_mode<synchronous>, transform_indices = @transform_6, window_bounds = array<i64: 1, 128>}, {transform_indices = @transform_7, window_bounds = array<i64: 8, 2>}]} {
    %c0 = arith.constant 0 : index
    %c0_0 = arith.constant 0 : index
    %0 = vector.load %arg1[%c0, %c0_0] : memref<8x2xf32, #tpu.memory_space<vmem>>, vector<8x2xf32>
    %c0_1 = arith.constant 0 : index
    %c0_2 = arith.constant 0 : index
    %1 = vector.load %arg2[%c0_1, %c0_2] : memref<2x128xf32, #tpu.memory_space<vmem>>, vector<2x128xf32>
    %c0_3 = arith.constant 0 : index
    %c0_4 = arith.constant 0 : index
    %2 = vector.load %arg3[%c0_3, %c0_4] : memref<1x128xf32, #tpu.memory_space<vmem>>, vector<1x128xf32>
    %3 = vector.extract_strided_slice %0 {offsets = [0, 0], sizes = [8, 1], strides = [1, 1]} : vector<8x2xf32> to vector<8x1xf32>
    %4 = vector.extract_strided_slice %1 {offsets = [0, 0], sizes = [1, 128], strides = [1, 1]} : vector<2x128xf32> to vector<1x128xf32>
    %5 = vector.broadcast %3 : vector<8x1xf32> to vector<8x128xf32>
    %6 = vector.broadcast %4 : vector<1x128xf32> to vector<8x128xf32>
    %7 = arith.mulf %5, %6 : vector<8x128xf32>
    %8 = vector.broadcast %2 : vector<1x128xf32> to vector<8x128xf32>
    %9 = arith.addf %8, %7 : vector<8x128xf32>
    %10 = vector.extract_strided_slice %0 {offsets = [0, 1], sizes = [8, 1], strides = [1, 1]} : vector<8x2xf32> to vector<8x1xf32>
    %11 = vector.extract_strided_slice %1 {offsets = [1, 0], sizes = [1, 128], strides = [1, 1]} : vector<2x128xf32> to vector<1x128xf32>
    %12 = vector.broadcast %10 : vector<8x1xf32> to vector<8x128xf32>
    %13 = vector.broadcast %11 : vector<1x128xf32> to vector<8x128xf32>
    %14 = arith.mulf %12, %13 : vector<8x128xf32>
    %15 = arith.addf %9, %14 : vector<8x128xf32>
    %cst = arith.constant 0.000000e+00 : f32
    %16 = vector.broadcast %cst : f32 to vector<8x128xf32>
    %17 = arith.maximumf %15, %16 : vector<8x128xf32>
    %c0_5 = arith.constant 0 : index
    %c0_6 = arith.constant 0 : index
    %18 = vector.load %arg4[%c0_5, %c0_6] : memref<128x128xf32, #tpu.memory_space<vmem>>, vector<128x128xf32>
    %cst_7 = arith.constant dense<0.000000e+00> : vector<8x128xf32>
    %19 = tpu.matmul %17, %18, %cst_7 {dimension_numbers = #tpu.dot_dimension_numbers<[1], [0], [0], [1], [0, 0, 1, 1], [], []>} : vector<8x128xf32>, vector<128x128xf32>, vector<8x128xf32> -> vector<8x128xf32>
    %c0_8 = arith.constant 0 : index
    %c0_9 = arith.constant 0 : index
    %20 = vector.load %arg5[%c0_8, %c0_9] : memref<1x128xf32, #tpu.memory_space<vmem>>, vector<1x128xf32>
    %21 = vector.broadcast %20 : vector<1x128xf32> to vector<8x128xf32>
    %22 = arith.addf %19, %21 : vector<8x128xf32>
    %cst_10 = arith.constant 0.000000e+00 : f32
    %23 = vector.broadcast %cst_10 : f32 to vector<8x128xf32>
    %24 = arith.maximumf %22, %23 : vector<8x128xf32>
    %c0_11 = arith.constant 0 : index
    %c0_12 = arith.constant 0 : index
    %25 = vector.load %arg6[%c0_11, %c0_12] : memref<128x128xf32, #tpu.memory_space<vmem>>, vector<128x128xf32>
    %cst_13 = arith.constant dense<0.000000e+00> : vector<8x128xf32>
    %26 = tpu.matmul %24, %25, %cst_13 {dimension_numbers = #tpu.dot_dimension_numbers<[1], [0], [0], [1], [0, 0, 1, 1], [], []>} : vector<8x128xf32>, vector<128x128xf32>, vector<8x128xf32> -> vector<8x128xf32>
    %c0_14 = arith.constant 0 : index
    %c0_15 = arith.constant 0 : index
    %27 = vector.load %arg7[%c0_14, %c0_15] : memref<1x128xf32, #tpu.memory_space<vmem>>, vector<1x128xf32>
    %28 = vector.broadcast %27 : vector<1x128xf32> to vector<8x128xf32>
    %29 = arith.addf %26, %28 : vector<8x128xf32>
    %30 = vector.extract_strided_slice %29 {offsets = [0, 0], sizes = [8, 2], strides = [1, 1]} : vector<8x128xf32> to vector<8x2xf32>
    %c0_16 = arith.constant 0 : index
    %c0_17 = arith.constant 0 : index
    %31 = vector.load %arg8[%c0_16, %c0_17] : memref<8x2xf32, #tpu.memory_space<vmem>>, vector<8x2xf32>
    tpu.vector_store %arg8[%c0_16, %c0_17], %30 {strides = array<i32>} : memref<8x2xf32, #tpu.memory_space<vmem>>, vector<8x2xf32>,
    return
  }
  func.func @transform_0(%arg0: i32) -> (i32, i32) {
    %c0_i32 = arith.constant 0 : i32
    %c0_i32_0 = arith.constant 0 : i32
    return %arg0, %c0_i32 : i32, i32
  }
  func.func @transform_1(%arg0: i32) -> (i32, i32) {
    %c0_i32 = arith.constant 0 : i32
    %c0_i32_0 = arith.constant 0 : i32
    %c0_i32_1 = arith.constant 0 : i32
    return %c0_i32, %c0_i32_0 : i32, i32
  }
  func.func @transform_2(%arg0: i32) -> (i32, i32) {
    %c0_i32 = arith.constant 0 : i32
    %c0_i32_0 = arith.constant 0 : i32
    %c0_i32_1 = arith.constant 0 : i32
    return %c0_i32, %c0_i32_0 : i32, i32
  }
  func.func @transform_3(%arg0: i32) -> (i32, i32) {
    %c0_i32 = arith.constant 0 : i32
    %c0_i32_0 = arith.constant 0 : i32
    %c0_i32_1 = arith.constant 0 : i32
    return %c0_i32, %c0_i32_0 : i32, i32
  }
  func.func @transform_4(%arg0: i32) -> (i32, i32) {
    %c0_i32 = arith.constant 0 : i32
    %c0_i32_0 = arith.constant 0 : i32
    %c0_i32_1 = arith.constant 0 : i32
    return %c0_i32, %c0_i32_0 : i32, i32
  }
  func.func @transform_5(%arg0: i32) -> (i32, i32) {
    %c0_i32 = arith.constant 0 : i32
    %c0_i32_0 = arith.constant 0 : i32
    %c0_i32_1 = arith.constant 0 : i32
    return %c0_i32, %c0_i32_0 : i32, i32
  }
  func.func @transform_6(%arg0: i32) -> (i32, i32) {
    %c0_i32 = arith.constant 0 : i32
    %c0_i32_0 = arith.constant 0 : i32
    %c0_i32_1 = arith.constant 0 : i32
    return %c0_i32, %c0_i32_0 : i32, i32
  }
  func.func @transform_7(%arg0: i32) -> (i32, i32) {
    %c0_i32 = arith.constant 0 : i32
    %c0_i32_0 = arith.constant 0 : i32
    return %arg0, %c0_i32 : i32, i32
  }
}

</mosaic_0001>

<llo_original>
// kernel: tpu_custom_call.1
$region0: #{tpu_custom_call.1}
  #allocation0 [shape = 'u32[]', space=smem, size = 0x4, offset = 0x4, fixed_abs, tag = 'smem constant byte address 0x4 - core index']
  #allocation1 [shape = 'u32[144,128]{1,0:T(1,128)}', space=vmem, size = 0x12000, scoped, tag = 'internal scratch']
  %s0 = inlined_call_operand.vmem [shape: f32[8,2], index: 0, kind: input, shape index: {}]
  %s1 = inlined_call_operand.vmem [shape: f32[2,128], index: 1, kind: input, shape index: {}]
  %s2 = inlined_call_operand.vmem [shape: f32[1,128], index: 2, kind: input, shape index: {}]
  %s3 = inlined_call_operand.hbm [shape: f32[128,128], index: 3, kind: input, shape index: {}]
  %s4 = inlined_call_operand.vmem [shape: f32[1,128], index: 4, kind: input, shape index: {}]
  %s5 = inlined_call_operand.hbm [shape: f32[128,128], index: 5, kind: input, shape index: {}]
  %s6 = inlined_call_operand.vmem [shape: f32[1,128], index: 6, kind: input, shape index: {}]
  %s7 = inlined_call_operand.vmem [shape: f32[8,2], index: 7, kind: output, shape index: {}]
  %s8 = sld [smem:[#allocation0]]
  $region46: #{tpu_custom_call.1} parent=0
    _
  %s10 = ssub.s32 1, %s8
  %s11 = scalar_select 0, %s10, %s8
  $region1: #{tpu_custom_call.1} parent=0
    #allocation2 [shape = 'u8[65536]{0}', space=vmem, size = 0x10000, scoped, tag = 'input window, operand 3, single buffered']
    #allocation3 [shape = 's32[1]{0}', space=sflag, size = 0x4, scoped, tag = 'scoped memory for tpu_custom_call.1']
    #allocation4 [shape = 'u8[65536]{0}', space=vmem, size = 0x10000, scoped, tag = 'input window, operand 5, single buffered']
    #allocation5 [shape = 's32[1]{0}', space=sflag, size = 0x4, scoped, tag = 'scoped memory for tpu_custom_call.1']
    %12 = vsyncpa [#allocation3], 0
    %13 = vsyncpa [#allocation5], 0
    // Predicated region
    $region2: #{tpu_custom_call.1} parent=1 // pred_check
      _
    $region3: #{tpu_custom_call.1} parent=1 // pred_check_branch
      %15 = sbr.rel (0) target = $region5
    $region4: #{tpu_custom_call.1} parent=1 // pred_region
      _
    $region5: #{tpu_custom_call.1} parent=1 // pred_fallthru
      _
    // Predicated region
    $region6: #{tpu_custom_call.1} parent=1 // pred_check
      _
    $region7: #{tpu_custom_call.1} parent=1 // pred_check_branch
      %17 = sbr.rel (0) target = $region9
    $region8: #{tpu_custom_call.1} parent=1 // pred_region
      _
    $region9: #{tpu_custom_call.1} parent=1 // pred_fallthru
      _
    // Predicated region
    $region10: #{tpu_custom_call.1} parent=1 // pred_check
      _
    $region11: #{tpu_custom_call.1} parent=1 // pred_check_branch
      %19 = sbr.rel (0) target = $region13
    $region12: #{tpu_custom_call.1} parent=1 // pred_region
      _
    $region13: #{tpu_custom_call.1} parent=1 // pred_fallthru
      _
    // Predicated region
    $region14: #{tpu_custom_call.1} parent=1 // pred_check
      _
    $region15: #{tpu_custom_call.1} parent=1 // pred_check_branch
      %21 = sbr.rel (0) target = $region17
    $region16: #{tpu_custom_call.1} parent=1 // pred_region
      %s23 = ssub.s32 2048, 2048
      %24 = vsyncadd [#allocation3], %s23
      %s25 = sshll.u32 [#allocation2], 4
      %s26 = int_to_ptr.vmem [resolvable:$true] %s25
      %31 = dma.hbm_to_vmem [thread:$0]  %s3, 2048, %s26, [#allocation3], 128, 128, 8
    $region17: #{tpu_custom_call.1} parent=1 // pred_fallthru
      _
    // Predicated region
    $region18: #{tpu_custom_call.1} parent=1 // pred_check
      _
    $region19: #{tpu_custom_call.1} parent=1 // pred_check_branch
      %33 = sbr.rel (0) target = $region21
    $region20: #{tpu_custom_call.1} parent=1 // pred_region
      _
    $region21: #{tpu_custom_call.1} parent=1 // pred_fallthru
      _
    // Predicated region
    $region22: #{tpu_custom_call.1} parent=1 // pred_check
      _
    $region23: #{tpu_custom_call.1} parent=1 // pred_check_branch
      %35 = sbr.rel (0) target = $region25
    $region24: #{tpu_custom_call.1} parent=1 // pred_region
      %s37 = ssub.s32 2048, 2048
      %38 = vsyncadd [#allocation5], %s37
      %s39 = sshll.u32 [#allocation4], 4
      %s40 = int_to_ptr.vmem [resolvable:$true] %s39
      %45 = dma.hbm_to_vmem [thread:$0]  %s5, 2048, %s40, [#allocation5], 128, 128, 8
    $region25: #{tpu_custom_call.1} parent=1 // pred_fallthru
      _
    // Predicated region
    $region26: #{tpu_custom_call.1} parent=1 // pred_check
      _
    $region27: #{tpu_custom_call.1} parent=1 // pred_check_branch
      %47 = sbr.rel (0) target = $region29
    $region28: #{tpu_custom_call.1} parent=1 // pred_region
      _
    $region29: #{tpu_custom_call.1} parent=1 // pred_fallthru
      _
    // Predicated region
    $region30: #{tpu_custom_call.1} parent=1 // pred_check
      _
    $region31: #{tpu_custom_call.1} parent=1 // pred_check_branch
      %49 = sbr.rel (0) target = $region33
    $region32: #{tpu_custom_call.1} parent=1 // pred_region
      %50 = dma.done [#allocation3], 2048
    $region33: #{tpu_custom_call.1} parent=1 // pred_fallthru
      _
    // Predicated region
    $region34: #{tpu_custom_call.1} parent=1 // pred_check
      _
    $region35: #{tpu_custom_call.1} parent=1 // pred_check_branch
      %52 = sbr.rel (0) target = $region37
    $region36: #{tpu_custom_call.1} parent=1 // pred_region
      %53 = dma.done [#allocation5], 2048
    $region37: #{tpu_custom_call.1} parent=1 // pred_fallthru
      _
    %v54 = vld [vmem:[%s0] sm:$0xff]
    %v55 = vld [vmem:[%s1] sm:$0x3]
    %v56 = vld [vmem:[%s2] sm:$0x1]
    %58 = vset.pattern.permute.xlu0 0
    %59 = vperm.xlu0 %58, %v54
    %v60 = vpop.permute.xlu0 %59
    %v62 = vlaneseq
    %v63 = vshrl.u32 %v62, 7
    %v64 = vsub.s32 0, %v63
    %v65 = vrot.slane %v55, %v64
    %v66 = vmul.f32 %v60, %v65
    %v68 = vlaneseq
    %v69 = vshrl.u32 %v68, 7
    %v70 = vsub.s32 0, %v69
    %v71 = vrot.slane %v56, %v70
    %v73 = vadd.f32 %v71, %v66
    %74 = vset.pattern.permute.xlu0 1
    %75 = vperm.xlu0 %74, %v54
    %v76 = vpop.permute.xlu0 %75
    %v78 = vlaneseq
    %v79 = vshrl.u32 %v78, 7
    %v80 = vsub.s32 1, %v79
    %v81 = vrot.slane %v55, %v80
    %v82 = vmul.f32 %v76, %v81
    %v83 = vadd.f32 %v73, %v82
    %v84 = vmax.f32 %v83, 0.0
    %v85 = vld [vmem:[#allocation2] sm:$0xff]
    %v86 = vld [vmem:[#allocation2 + $0x8] sm:$0xff]
    %v87 = vld [vmem:[#allocation2 + $0x10] sm:$0xff]
    %v88 = vld [vmem:[#allocation2 + $0x18] sm:$0xff]
    %v89 = vld [vmem:[#allocation2 + $0x20] sm:$0xff]
    %v90 = vld [vmem:[#allocation2 + $0x28] sm:$0xff]
    %v91 = vld [vmem:[#allocation2 + $0x30] sm:$0xff]
    %v92 = vld [vmem:[#allocation2 + $0x38] sm:$0xff]
    %v93 = vld [vmem:[#allocation2 + $0x40] sm:$0xff]
    %v94 = vld [vmem:[#allocation2 + $0x48] sm:$0xff]
    %v95 = vld [vmem:[#allocation2 + $0x50] sm:$0xff]
    %v96 = vld [vmem:[#allocation2 + $0x58] sm:$0xff]
    %v97 = vld [vmem:[#allocation2 + $0x60] sm:$0xff]
    %v98 = vld [vmem:[#allocation2 + $0x68] sm:$0xff]
    %v99 = vld [vmem:[#allocation2 + $0x70] sm:$0xff]
    %v100 = vld [vmem:[#allocation2 + $0x78] sm:$0xff]
    %v101 = vld [vmem:[%s4] sm:$0x1]
    %v103 = vlaneseq
    %v104 = vshrl.u32 %v103, 7
    %v105 = vsub.s32 0, %v104
    %v106 = vrot.slane %v101, %v105
    %108 = vmatprep.subr.mxu0 0.0
    %109 = vmatpush1.msra.mxu0 %v100
    %110 = vmatprep.subr.mxu0 0.0
    %111 = vmatpush1.msra.mxu0 %v99
    %112 = vmatprep.subr.mxu0 0.0
    %113 = vmatpush1.msra.mxu0 %v98
    %114 = vmatprep.subr.mxu0 0.0
    %115 = vmatpush1.msra.mxu0 %v97
    %116 = vmatprep.subr.mxu0 0.0
    %117 = vmatpush1.msra.mxu0 %v96
    %118 = vmatprep.subr.mxu0 0.0
    %119 = vmatpush1.msra.mxu0 %v95
    %120 = vmatprep.subr.mxu0 0.0
    %121 = vmatpush1.msra.mxu0 %v94
    %122 = vmatprep.subr.mxu0 0.0
    %123 = vmatpush1.msra.mxu0 %v93
    %124 = vmatprep.subr.mxu0 0.0
    %125 = vmatpush1.msra.mxu0 %v92
    %126 = vmatprep.subr.mxu0 0.0
    %127 = vmatpush1.msra.mxu0 %v91
    %128 = vmatprep.subr.mxu0 0.0
    %129 = vmatpush1.msra.mxu0 %v90
    %130 = vmatprep.subr.mxu0 0.0
    %131 = vmatpush1.msra.mxu0 %v89
    %132 = vmatprep.subr.mxu0 0.0
    %133 = vmatpush1.msra.mxu0 %v88
    %134 = vmatprep.subr.mxu0 0.0
    %135 = vmatpush1.msra.mxu0 %v87
    %136 = vmatprep.subr.mxu0 0.0
    %137 = vmatpush1.msra.mxu0 %v86
    %138 = vmatprep.subr.mxu0 0.0
    %139 = vmatpush1.msra.mxu0 %v85
    %140 = vmatprep.subr.mxu0 0.0
    %141 = vmatpush2.msra.mxu0 0.0
    %142 = vmatprep.subr.mxu0 0.0
    %143 = vmatpush2.msra.mxu0 0.0
    %144 = vmatprep.subr.mxu0 0.0
    %145 = vmatpush2.msra.mxu0 0.0
    %146 = vmatprep.subr.mxu0 0.0
    %147 = vmatpush2.msra.mxu0 0.0
    %148 = vmatprep.subr.mxu0 0.0
    %149 = vmatpush2.msra.mxu0 0.0
    %150 = vmatprep.subr.mxu0 0.0
    %151 = vmatpush2.msra.mxu0 0.0
    %152 = vmatprep.subr.mxu0 0.0
    %153 = vmatpush2.msra.mxu0 0.0
    %154 = vmatprep.subr.mxu0 0.0
    %155 = vmatpush2.msra.mxu0 0.0
    %156 = vmatprep.subr.mxu0 0.0
    %157 = vmatpush2.msra.mxu0 0.0
    %158 = vmatprep.subr.mxu0 0.0
    %159 = vmatpush2.msra.mxu0 0.0
    %160 = vmatprep.subr.mxu0 0.0
    %161 = vmatpush2.msra.mxu0 0.0
    %162 = vmatprep.subr.mxu0 0.0
    %163 = vmatpush2.msra.mxu0 0.0
    %164 = vmatprep.subr.mxu0 0.0
    %165 = vmatpush2.msra.mxu0 0.0
    %166 = vmatprep.subr.mxu0 0.0
    %167 = vmatpush2.msra.mxu0 0.0
    %168 = vmatprep.subr.mxu0 0.0
    %169 = vmatpush2.msra.mxu0 0.0
    %170 = vmatprep.subr.mxu0 0.0
    %171 = vmatpush2.msra.mxu0 0.0
    %172 = vmatprep.mubr.f32.mxu0 0.0
    %173 = vmatmul.mubr.f32.gmra.mxu0 %v84
    %v174 = vpop.f32.mrf.mxu0
    %v175 = vadd.f32 %v106, %v174
    %v176 = vpop.f32.mrf.mxu0
    %177 = vdwg.mxu0
    %v178 = vmax.f32 %v175, 0.0
    %v179 = vld [vmem:[#allocation4] sm:$0xff]
    %v180 = vld [vmem:[#allocation4 + $0x8] sm:$0xff]
    %v181 = vld [vmem:[#allocation4 + $0x10] sm:$0xff]
    %v182 = vld [vmem:[#allocation4 + $0x18] sm:$0xff]
    %v183 = vld [vmem:[#allocation4 + $0x20] sm:$0xff]
    %v184 = vld [vmem:[#allocation4 + $0x28] sm:$0xff]
    %v185 = vld [vmem:[#allocation4 + $0x30] sm:$0xff]
    %v186 = vld [vmem:[#allocation4 + $0x38] sm:$0xff]
    %v187 = vld [vmem:[#allocation4 + $0x40] sm:$0xff]
    %v188 = vld [vmem:[#allocation4 + $0x48] sm:$0xff]
    %v189 = vld [vmem:[#allocation4 + $0x50] sm:$0xff]
    %v190 = vld [vmem:[#allocation4 + $0x58] sm:$0xff]
    %v191 = vld [vmem:[#allocation4 + $0x60] sm:$0xff]
    %v192 = vld [vmem:[#allocation4 + $0x68] sm:$0xff]
    %v193 = vld [vmem:[#allocation4 + $0x70] sm:$0xff]
    %v194 = vld [vmem:[#allocation4 + $0x78] sm:$0xff]
    %v195 = vld [vmem:[%s6] sm:$0x1]
    %v197 = vlaneseq
    %v198 = vshrl.u32 %v197, 7
    %v199 = vsub.s32 0, %v198
    %v200 = vrot.slane %v195, %v199
    %202 = vmatprep.subr.mxu0 0.0
    %203 = vmatpush1.msra.mxu0 %v194
    %204 = vmatprep.subr.mxu0 0.0
    %205 = vmatpush1.msra.mxu0 %v193
    %206 = vmatprep.subr.mxu0 0.0
    %207 = vmatpush1.msra.mxu0 %v192
    %208 = vmatprep.subr.mxu0 0.0
    %209 = vmatpush1.msra.mxu0 %v191
    %210 = vmatprep.subr.mxu0 0.0
    %211 = vmatpush1.msra.mxu0 %v190
    %212 = vmatprep.subr.mxu0 0.0
    %213 = vmatpush1.msra.mxu0 %v189
    %214 = vmatprep.subr.mxu0 0.0
    %215 = vmatpush1.msra.mxu0 %v188
    %216 = vmatprep.subr.mxu0 0.0
    %217 = vmatpush1.msra.mxu0 %v187
    %218 = vmatprep.subr.mxu0 0.0
    %219 = vmatpush1.msra.mxu0 %v186
    %220 = vmatprep.subr.mxu0 0.0
    %221 = vmatpush1.msra.mxu0 %v185
    %222 = vmatprep.subr.mxu0 0.0
    %223 = vmatpush1.msra.mxu0 %v184
    %224 = vmatprep.subr.mxu0 0.0
    %225 = vmatpush1.msra.mxu0 %v183
    %226 = vmatprep.subr.mxu0 0.0
    %227 = vmatpush1.msra.mxu0 %v182
    %228 = vmatprep.subr.mxu0 0.0
    %229 = vmatpush1.msra.mxu0 %v181
    %230 = vmatprep.subr.mxu0 0.0
    %231 = vmatpush1.msra.mxu0 %v180
    %232 = vmatprep.subr.mxu0 0.0
    %233 = vmatpush1.msra.mxu0 %v179
    %234 = vmatprep.subr.mxu0 0.0
    %235 = vmatpush2.msra.mxu0 0.0
    %236 = vmatprep.subr.mxu0 0.0
    %237 = vmatpush2.msra.mxu0 0.0
    %238 = vmatprep.subr.mxu0 0.0
    %239 = vmatpush2.msra.mxu0 0.0
    %240 = vmatprep.subr.mxu0 0.0
    %241 = vmatpush2.msra.mxu0 0.0
    %242 = vmatprep.subr.mxu0 0.0
    %243 = vmatpush2.msra.mxu0 0.0
    %244 = vmatprep.subr.mxu0 0.0
    %245 = vmatpush2.msra.mxu0 0.0
    %246 = vmatprep.subr.mxu0 0.0
    %247 = vmatpush2.msra.mxu0 0.0
    %248 = vmatprep.subr.mxu0 0.0
    %249 = vmatpush2.msra.mxu0 0.0
    %250 = vmatprep.subr.mxu0 0.0
    %251 = vmatpush2.msra.mxu0 0.0
    %252 = vmatprep.subr.mxu0 0.0
    %253 = vmatpush2.msra.mxu0 0.0
    %254 = vmatprep.subr.mxu0 0.0
    %255 = vmatpush2.msra.mxu0 0.0
    %256 = vmatprep.subr.mxu0 0.0
    %257 = vmatpush2.msra.mxu0 0.0
    %258 = vmatprep.subr.mxu0 0.0
    %259 = vmatpush2.msra.mxu0 0.0
    %260 = vmatprep.subr.mxu0 0.0
    %261 = vmatpush2.msra.mxu0 0.0
    %262 = vmatprep.subr.mxu0 0.0
    %263 = vmatpush2.msra.mxu0 0.0
    %264 = vmatprep.subr.mxu0 0.0
    %265 = vmatpush2.msra.mxu0 0.0
    %266 = vmatprep.mubr.f32.mxu0 0.0
    %267 = vmatmul.mubr.f32.gmra.mxu0 %v178
    %v268 = vpop.f32.mrf.mxu0
    %v269 = vadd.f32 %v200, %v268
    %v270 = vpop.f32.mrf.mxu0
    %271 = vdwg.mxu0
    %vm272 = vcmask 15360
    %273 = vst.msk [vmem:[%s7] sm:$0xff] %vm272, %v269
    // Predicated region
    $region38: #{tpu_custom_call.1} parent=1 // pred_check
      _
    $region39: #{tpu_custom_call.1} parent=1 // pred_check_branch
      %275 = sbr.rel (0) target = $region41
    $region40: #{tpu_custom_call.1} parent=1 // pred_region
      _
    $region41: #{tpu_custom_call.1} parent=1 // pred_fallthru
      _
    // Predicated region
    $region42: #{tpu_custom_call.1} parent=1 // pred_check
      _
    $region43: #{tpu_custom_call.1} parent=1 // pred_check_branch
      %277 = sbr.rel (0) target = $region45
    $region44: #{tpu_custom_call.1} parent=1 // pred_region
      _
    $region45: #{tpu_custom_call.1} parent=1 // pred_fallthru
      _
    %278 = vsyncpa [#allocation3], 1
    %279 = vsyncpa [#allocation5], 1

</llo_original>
